<compile_context>
chip_gen: v5e
topology: v5e:2x2
jax: 0.10.0
libtpu: 0.0.40
codegen_flags: <defaults>
</compile_context>

<pallas_src>
import functools

import jax
import jax.numpy as jnp
from jax.experimental import pallas as pl
from jax.experimental.pallas import tpu as pltpu


# ---------------------------------------------------------------------------
# In-kernel helpers
# ---------------------------------------------------------------------------
def _layernorm(x, gamma, beta, eps):
    mu = jnp.mean(x, axis=-1, keepdims=True)
    var = jnp.mean((x - mu) ** 2, axis=-1, keepdims=True)
    return (x - mu) * jax.lax.rsqrt(var + eps) * gamma + beta


def _gelu(x):
    # q.GeLU (tanh approximation, as used by BERT).
    # TODO(synk): if the qelos reference uses exact erf-GeLU, outputs differ ~1e-3.
    return 0.5 * x * (1.0 + jnp.tanh(0.7978845608028654 * (x + 0.044715 * x * x * x)))


def _linear(x, w, b):
    # x: (N, Din), w: (Din, Dout) pre-transposed, b: (1, Dout)
    return jnp.dot(x, w, preferred_element_type=jnp.float32) + b


# ---------------------------------------------------------------------------
# Kernel 1: BERT embeddings (sum of three embeddings + LayerNorm), grid over B.
#   pos_emb arrives un-broadcast as (S, D) and broadcasts inside the kernel.
# ---------------------------------------------------------------------------
def emb_kernel(we_ref, te_ref, pe_ref, g_ref, b_ref, o_ref):
    s = we_ref[...] + te_ref[...] + pe_ref[...]
    o_ref[...] = _layernorm(s, g_ref[...], b_ref[...], 1e-12)


# ---------------------------------------------------------------------------
# Kernel 2a: self-attention + residual + LayerNorm (one batch element per step)
#   h1 = LN_slf(x + MHA(x))
#   Weights are head-split: wq/wk/wv: (H, D, dh); wo: (H, dh, D).
#   Per-head loop accumulates ctx_h @ Wo[h]; no lane slicing / concatenation.
# ---------------------------------------------------------------------------
def attn_kernel(nheads, h_ref, bias_ref,
                wq_ref, bq_ref, wk_ref, bk_ref, wv_ref, bv_ref,
                wo_ref, bo_ref, g1_ref, b1_ref, o_ref):
    x = h_ref[...]                                   # (S, D)
    S, D = x.shape
    dh = D // nheads
    scale = 1.0 / jnp.sqrt(jnp.float32(dh))          # scale=True in qelos MHA
    bias = bias_ref[...]                             # (1, S) additive key-side mask

    attn_out = jnp.broadcast_to(bo_ref[...], (S, D)) # start from output-proj bias
    for h in range(nheads):                          # static unroll; 1 acc live
        qh = jnp.dot(x, wq_ref[h], preferred_element_type=jnp.float32) + bq_ref[h]
        kh = jnp.dot(x, wk_ref[h], preferred_element_type=jnp.float32) + bk_ref[h]
        vh = jnp.dot(x, wv_ref[h], preferred_element_type=jnp.float32) + bv_ref[h]
        sc = jax.lax.dot_general(qh, kh, (((1,), (1,)), ((), ())),
                                 preferred_element_type=jnp.float32) * scale
        sc = sc + bias                               # (S,S) + (1,S)
        sc = sc - jnp.max(sc, axis=-1, keepdims=True)
        ex = jnp.exp(sc)
        p = ex * pl.reciprocal(jnp.sum(ex, axis=-1, keepdims=True), approx=True)
        ctx = jnp.dot(p, vh, preferred_element_type=jnp.float32)       # (S, dh)
        attn_out = attn_out + jnp.dot(ctx, wo_ref[h],
                                      preferred_element_type=jnp.float32)

    o_ref[...] = _layernorm(x + attn_out, g1_ref[...], b1_ref[...], 1e-5)


# ---------------------------------------------------------------------------
# Kernel 2b: position-wise FFN + residual + LayerNorm (token-tiled grid)
#   h2 = LN_ff(h1 + projB(GeLU(projA(h1))))
# ---------------------------------------------------------------------------
def ffn_kernel(h_ref, wa_ref, ba_ref, wb_ref, bb_ref, g2_ref, b2_ref, o_ref):
    x = h_ref[...]                                   # (T_tile, D)
    ff = _gelu(_linear(x, wa_ref[...], ba_ref[...]))
    ff = _linear(ff, wb_ref[...], bb_ref[...])
    o_ref[...] = _layernorm(x + ff, g2_ref[...], b2_ref[...], 1e-5)


# ---------------------------------------------------------------------------
# Kernel 3: BERT pooler (dense + tanh on first token; only token 0 is DMA'd)
# ---------------------------------------------------------------------------
def pooler_kernel(x0_ref, w_ref, b_ref, o_ref):
    o_ref[...] = jnp.tanh(_linear(x0_ref[...], w_ref[...], b_ref[...]))


# ---------------------------------------------------------------------------
# Spec helpers / wrappers
# ---------------------------------------------------------------------------
def _const_spec(shape):
    """Whole-array block with a constant index map -> stays VMEM-resident."""
    nd = len(shape)
    return pl.BlockSpec(shape, lambda *args, nd=nd: (0,) * nd)


def _pick_token_tile(n, target=256):
    """Largest multiple-of-8 divisor of n that is <= target (or n itself)."""
    if n <= target:
        return n
    t = (target // 8) * 8
    while t >= 8:
        if n % t == 0:
            return t
        t -= 8
    return n


def bert_embeddings(params, input_ids, token_type_ids):
    B, S = input_ids.shape
    D = params['word_emb'].shape[1]
    # Gathers are glue (plain JAX); sum + LayerNorm run in the Pallas kernel.
    we = jnp.take(params['word_emb'], input_ids, axis=0)          # (B, S, D)
    te = jnp.take(params['type_emb'], token_type_ids, axis=0)     # (B, S, D)
    pe = params['pos_emb'][:S]                                    # (S, D), NOT broadcast
    return pl.pallas_call(
        emb_kernel,
        grid=(B,),
        out_shape=jax.ShapeDtypeStruct((B, S, D), jnp.float32),
        in_specs=[
            pl.BlockSpec((None, S, D), lambda b: (b, 0, 0)),
            pl.BlockSpec((None, S, D), lambda b: (b, 0, 0)),
            _const_spec((S, D)),
            _const_spec((1, D)),
            _const_spec((1, D)),
        ],
        out_specs=pl.BlockSpec((None, S, D), lambda b: (b, 0, 0)),
        compiler_params=pltpu.CompilerParams(dimension_semantics=("parallel",)),
    )(we, te, pe, params['emb_ln_g'], params['emb_ln_b'])


def encoder_block(h, attn_bias, lw, nheads):
    B, S, D = h.shape

    # --- attention + residual + LN1: grid over batch, weights VMEM-resident ---
    h1 = pl.pallas_call(
        functools.partial(attn_kernel, nheads),
        grid=(B,),
        out_shape=jax.ShapeDtypeStruct((B, S, D), jnp.float32),
        in_specs=[
            pl.BlockSpec((None, S, D), lambda b: (b, 0, 0)),      # hidden state
            pl.BlockSpec((None, 1, S), lambda b: (b, 0, 0)),      # additive mask bias
            _const_spec(lw['wq_h'].shape), _const_spec(lw['bq_h'].shape),
            _const_spec(lw['wk_h'].shape), _const_spec(lw['bk_h'].shape),
            _const_spec(lw['wv_h'].shape), _const_spec(lw['bv_h'].shape),
            _const_spec(lw['wo_h'].shape), _const_spec(lw['bo'].shape),
            _const_spec(lw['g1'].shape), _const_spec(lw['b1'].shape),
        ],
        out_specs=pl.BlockSpec((None, S, D), lambda b: (b, 0, 0)),
        compiler_params=pltpu.CompilerParams(dimension_semantics=("parallel",)),
    )(h, attn_bias, lw['wq_h'], lw['bq_h'], lw['wk_h'], lw['bk_h'],
      lw['wv_h'], lw['bv_h'], lw['wo_h'], lw['bo'], lw['g1'], lw['b1'])

    # --- FFN + residual + LN2: grid over token tiles, weights VMEM-resident ---
    T = B * S
    tile = _pick_token_tile(T)
    h1_2d = h1.reshape(T, D)
    h2_2d = pl.pallas_call(
        ffn_kernel,
        grid=(T // tile,),
        out_shape=jax.ShapeDtypeStruct((T, D), jnp.float32),
        in_specs=[
            pl.BlockSpec((tile, D), lambda t: (t, 0)),
            _const_spec(lw['wa'].shape), _const_spec(lw['ba'].shape),
            _const_spec(lw['wb'].shape), _const_spec(lw['bb'].shape),
            _const_spec(lw['g2'].shape), _const_spec(lw['b2'].shape),
        ],
        out_specs=pl.BlockSpec((tile, D), lambda t: (t, 0)),
        compiler_params=pltpu.CompilerParams(dimension_semantics=("parallel",)),
        input_output_aliases={0: 0},     # h1 is dead after this call; reuse buffer
    )(h1_2d, lw['wa'], lw['ba'], lw['wb'], lw['bb'], lw['g2'], lw['b2'])
    return h2_2d.reshape(B, S, D)


def pooler(h_last, params):
    x0 = h_last[:, 0, :]                 # (B, D): only token 0 reaches the kernel
    B, D = x0.shape
    vmem = pl.BlockSpec(memory_space=pltpu.MemorySpace.VMEM)
    return pl.pallas_call(
        pooler_kernel,
        out_shape=jax.ShapeDtypeStruct((B, D), jnp.float32),
        in_specs=[vmem, vmem, vmem],
        out_specs=pl.BlockSpec(memory_space=pltpu.MemorySpace.VMEM),
    )(x0, params['pool_w'], params['pool_b'])


def transformer_bert_forward(params, input_ids, token_type_ids=None, mask=None):
    """Mirrors TransformerBERT.forward: returns (all_h, pooled_output)."""
    if token_type_ids is None:
        token_type_ids = jnp.zeros_like(input_ids)
    if mask is None:
        mask = jnp.ones_like(input_ids)
    # Additive key-side mask bias, computed once and shared by all layers/heads.
    attn_bias = jnp.where(mask != 0, 0.0, -1e9).astype(jnp.float32)[:, None, :]

    h = bert_embeddings(params, input_ids, token_type_ids)
    all_h = []
    for lw in params['layers']:
        h = encoder_block(h, attn_bias, lw, params['nheads'])
        all_h.append(h)
    pooled = pooler(all_h[-1], params)
    return all_h, pooled


# ---------------------------------------------------------------------------
# Parameter construction (torch-style) + one-time kernel-layout preparation
# ---------------------------------------------------------------------------
def make_params(key, dim, numwords, numlayers, numheads, innerdim, maxlen, numtypes,
                init_range=0.02):
    keys = iter(jax.random.split(key, 16 + 16 * numlayers))

    def nrm(shape):
        return jax.random.normal(next(keys), shape, jnp.float32) * init_range

    params = dict(
        nheads=numheads,
        word_emb=nrm((numwords, dim)),
        pos_emb=nrm((maxlen, dim)),
        type_emb=nrm((numtypes, dim)),
        emb_ln_g=jnp.ones((1, dim), jnp.float32),
        emb_ln_b=jnp.zeros((1, dim), jnp.float32),
        pool_w=nrm((dim, dim)),                       # torch-style (Dout, Din)
        pool_b=jnp.zeros((1, dim), jnp.float32),
        layers=[],
    )
    for _ in range(numlayers):
        lw = dict(
            wq=nrm((dim, dim)), bq=jnp.zeros((1, dim), jnp.float32),
            wk=nrm((dim, dim)), bk=jnp.zeros((1, dim), jnp.float32),
            wv=nrm((dim, dim)), bv=jnp.zeros((1, dim), jnp.float32),
            wo=nrm((dim, dim)), bo=jnp.zeros((1, dim), jnp.float32),
            g1=jnp.ones((1, dim), jnp.float32), b1=jnp.zeros((1, dim), jnp.float32),
            wa=nrm((innerdim, dim)), ba=jnp.zeros((1, innerdim), jnp.float32),
            wb=nrm((dim, innerdim)), bb=jnp.zeros((1, dim), jnp.float32),
            g2=jnp.ones((1, dim), jnp.float32), b2=jnp.zeros((1, dim), jnp.float32),
        )
        params['layers'].append(lw)
    return params


def prepare_params(raw):
    """One-time layout transform for the kernels:
       torch (Dout, Din) -> (Din, Dout) MXU-friendly, Q/K/V/O split per head so
       the kernel never slices/concatenates along the 128-lane axis."""
    nheads = raw['nheads']
    D = raw['word_emb'].shape[1]
    dh = D // nheads

    def headify_in(w):   # (Dout, Din) -> (H, Din, dh)
        return jnp.transpose(w.T.reshape(D, nheads, dh), (1, 0, 2))

    def headify_bias(b):  # (1, Dout) -> (H, 1, dh)
        return b.reshape(nheads, 1, dh)

    p = dict(
        nheads=nheads,
        word_emb=raw['word_emb'], pos_emb=raw['pos_emb'], type_emb=raw['type_emb'],
        emb_ln_g=raw['emb_ln_g'], emb_ln_b=raw['emb_ln_b'],
        pool_w=raw['pool_w'].T,                       # (Din, Dout)
        pool_b=raw['pool_b'],
        layers=[],
    )
    for lw in raw['layers']:
        kl = dict(
            wq_h=headify_in(lw['wq']), bq_h=headify_bias(lw['bq']),
            wk_h=headify_in(lw['wk']), bk_h=headify_bias(lw['bk']),
            wv_h=headify_in(lw['wv']), bv_h=headify_bias(lw['bv']),
            wo_h=lw['wo'].T.reshape(nheads, dh, D),   # (H, dh, D)
            bo=lw['bo'],
            g1=lw['g1'], b1=lw['b1'],
            wa=lw['wa'].T, ba=lw['ba'],               # (D, inner), (1, inner)
            wb=lw['wb'].T, bb=lw['bb'],               # (inner, D), (1, D)
            g2=lw['g2'], b2=lw['b2'],
        )
        p['layers'].append(kl)
    return p


# ---------------------------------------------------------------------------
if __name__ == "__main__":
    # Small BERT-like config: dim=32, 2 layers, 4 heads, inner=64, vocab=100.
    DIM, NUMWORDS, NUMLAYERS, NUMHEADS = 32, 100, 2, 4
    INNERDIM, MAXLEN, NUMTYPES = 64, 64, 16
    B, S = 2, 8

    key = jax.random.PRNGKey(0)
    pkey, ikey, tkey = jax.random.split(key, 3)
    raw_params = make_params(pkey, DIM, NUMWORDS, NUMLAYERS, NUMHEADS,
                             INNERDIM, MAXLEN, NUMTYPES)
    params = prepare_params(raw_params)

    input_ids = jax.random.randint(ikey, (B, S), 0, NUMWORDS, dtype=jnp.int32)
    token_type_ids = jax.random.randint(tkey, (B, S), 0, 2, dtype=jnp.int32)
    mask = jnp.ones((B, S), dtype=jnp.int32)

    all_h, pooled = transformer_bert_forward(params, input_ids, token_type_ids, mask)

    for h in all_h:
        jax.block_until_ready(h)
    jax.block_until_ready(pooled)

    assert len(all_h) == NUMLAYERS
    assert all_h[-1].shape == (B, S, DIM)
    assert pooled.shape == (B, DIM)
    assert bool(jnp.all(jnp.isfinite(all_h[-1]))) and bool(jnp.all(jnp.isfinite(pooled)))
    print("KERNEL_OK")
</pallas_src>

<mosaic_0001>
module attributes {stable_mosaic.version = 11 : i64} {
  func.func @emb_kernel(%arg0: i32, %arg1: memref<1x8x32xf32, #tpu.memory_space<vmem>>, %arg2: memref<1x8x32xf32, #tpu.memory_space<vmem>>, %arg3: memref<8x32xf32, #tpu.memory_space<vmem>>, %arg4: memref<1x32xf32, #tpu.memory_space<vmem>>, %arg5: memref<1x32xf32, #tpu.memory_space<vmem>>, %arg6: memref<1x8x32xf32, #tpu.memory_space<vmem>>) attributes {dimension_semantics = [#tpu.dimension_semantics<parallel>], iteration_bounds = array<i64: 2>, scalar_prefetch = 0 : i64, scratch_operands = 0 : i64, tpu.core_type = #tpu.core_type<tc>, window_params = [{transform_indices = @transform_0, window_bounds = array<i64: 1, 8, 32>}, {transform_indices = @transform_1, window_bounds = array<i64: 1, 8, 32>}, {pipeline_mode = #tpu.pipeline_mode<synchronous>, transform_indices = @transform_2, window_bounds = array<i64: 8, 32>}, {pipeline_mode = #tpu.pipeline_mode<synchronous>, transform_indices = @transform_3, window_bounds = array<i64: 1, 32>}, {pipeline_mode = #tpu.pipeline_mode<synchronous>, transform_indices = @transform_4, window_bounds = array<i64: 1, 32>}, {transform_indices = @transform_5, window_bounds = array<i64: 1, 8, 32>}]} {
    %c0 = arith.constant 0 : index
    %c0_0 = arith.constant 0 : index
    %c0_1 = arith.constant 0 : index
    %0 = vector.load %arg1[%c0, %c0_0, %c0_1] : memref<1x8x32xf32, #tpu.memory_space<vmem>>, vector<1x8x32xf32>
    %1 = vector.shape_cast %0 : vector<1x8x32xf32> to vector<8x32xf32>
    %c0_2 = arith.constant 0 : index
    %c0_3 = arith.constant 0 : index
    %c0_4 = arith.constant 0 : index
    %2 = vector.load %arg2[%c0_2, %c0_3, %c0_4] : memref<1x8x32xf32, #tpu.memory_space<vmem>>, vector<1x8x32xf32>
    %3 = vector.shape_cast %2 : vector<1x8x32xf32> to vector<8x32xf32>
    %4 = arith.addf %1, %3 : vector<8x32xf32>
    %c0_5 = arith.constant 0 : index
    %c0_6 = arith.constant 0 : index
    %5 = vector.load %arg3[%c0_5, %c0_6] : memref<8x32xf32, #tpu.memory_space<vmem>>, vector<8x32xf32>
    %6 = arith.addf %4, %5 : vector<8x32xf32>
    %c0_7 = arith.constant 0 : index
    %c0_8 = arith.constant 0 : index
    %7 = vector.load %arg4[%c0_7, %c0_8] : memref<1x32xf32, #tpu.memory_space<vmem>>, vector<1x32xf32>
    %c0_9 = arith.constant 0 : index
    %c0_10 = arith.constant 0 : index
    %8 = vector.load %arg5[%c0_9, %c0_10] : memref<1x32xf32, #tpu.memory_space<vmem>>, vector<1x32xf32>
    %cst = arith.constant dense<0.000000e+00> : vector<8xf32>
    %9 = vector.multi_reduction <add>, %6, %cst [1] : vector<8x32xf32> to vector<8xf32>
    %10 = vector.shape_cast %9 : vector<8xf32> to vector<8x1xf32>
    %cst_11 = arith.constant 3.200000e+01 : f32
    %11 = vector.broadcast %cst_11 : f32 to vector<8x1xf32>
    %12 = arith.divf %10, %11 : vector<8x1xf32>
    %13 = vector.broadcast %12 : vector<8x1xf32> to vector<8x32xf32>
    %14 = arith.subf %6, %13 : vector<8x32xf32>
    %15 = arith.mulf %14, %14 : vector<8x32xf32>
    %cst_12 = arith.constant dense<0.000000e+00> : vector<8xf32>
    %16 = vector.multi_reduction <add>, %15, %cst_12 [1] : vector<8x32xf32> to vector<8xf32>
    %17 = vector.shape_cast %16 : vector<8xf32> to vector<8x1xf32>
    %cst_13 = arith.constant 3.200000e+01 : f32
    %18 = vector.broadcast %cst_13 : f32 to vector<8x1xf32>
    %19 = arith.divf %17, %18 : vector<8x1xf32>
    %20 = vector.broadcast %12 : vector<8x1xf32> to vector<8x32xf32>
    %21 = arith.subf %6, %20 : vector<8x32xf32>
    %cst_14 = arith.constant 9.99999996E-13 : f32
    %22 = vector.broadcast %cst_14 : f32 to vector<8x1xf32>
    %23 = arith.addf %19, %22 : vector<8x1xf32>
    %24 = math.rsqrt %23 : vector<8x1xf32>
    %25 = vector.broadcast %24 : vector<8x1xf32> to vector<8x32xf32>
    %26 = arith.mulf %21, %25 : vector<8x32xf32>
    %27 = vector.broadcast %7 : vector<1x32xf32> to vector<8x32xf32>
    %28 = arith.mulf %26, %27 : vector<8x32xf32>
    %29 = vector.broadcast %8 : vector<1x32xf32> to vector<8x32xf32>
    %30 = arith.addf %28, %29 : vector<8x32xf32>
    %c0_15 = arith.constant 0 : index
    %c0_16 = arith.constant 0 : index
    %c0_17 = arith.constant 0 : index
    %31 = vector.load %arg6[%c0_15, %c0_16, %c0_17] : memref<1x8x32xf32, #tpu.memory_space<vmem>>, vector<1x8x32xf32>
    %32 = vector.shape_cast %31 : vector<1x8x32xf32> to vector<8x32xf32>
    %33 = vector.shape_cast %30 : vector<8x32xf32> to vector<1x8x32xf32>
    tpu.vector_store %arg6[%c0_15, %c0_16, %c0_17], %33 {strides = array<i32>} : memref<1x8x32xf32, #tpu.memory_space<vmem>>, vector<1x8x32xf32>,
    return
  }
  func.func @transform_0(%arg0: i32) -> (i32, i32, i32) {
    %c0_i32 = arith.constant 0 : i32
    %c0_i32_0 = arith.constant 0 : i32
    %c0_i32_1 = arith.constant 0 : i32
    return %arg0, %c0_i32, %c0_i32_0 : i32, i32, i32
  }
  func.func @transform_1(%arg0: i32) -> (i32, i32, i32) {
    %c0_i32 = arith.constant 0 : i32
    %c0_i32_0 = arith.constant 0 : i32
    %c0_i32_1 = arith.constant 0 : i32
    return %arg0, %c0_i32, %c0_i32_0 : i32, i32, i32
  }
  func.func @transform_2(%arg0: i32) -> (i32, i32) {
    %c0_i32 = arith.constant 0 : i32
    %c0_i32_0 = arith.constant 0 : i32
    %c0_i32_1 = arith.constant 0 : i32
    return %c0_i32, %c0_i32_0 : i32, i32
  }
  func.func @transform_3(%arg0: i32) -> (i32, i32) {
    %c0_i32 = arith.constant 0 : i32
    %c0_i32_0 = arith.constant 0 : i32
    %c0_i32_1 = arith.constant 0 : i32
    return %c0_i32, %c0_i32_0 : i32, i32
  }
  func.func @transform_4(%arg0: i32) -> (i32, i32) {
    %c0_i32 = arith.constant 0 : i32
    %c0_i32_0 = arith.constant 0 : i32
    %c0_i32_1 = arith.constant 0 : i32
    return %c0_i32, %c0_i32_0 : i32, i32
  }
  func.func @transform_5(%arg0: i32) -> (i32, i32, i32) {
    %c0_i32 = arith.constant 0 : i32
    %c0_i32_0 = arith.constant 0 : i32
    %c0_i32_1 = arith.constant 0 : i32
    return %arg0, %c0_i32, %c0_i32_0 : i32, i32, i32
  }
}

</mosaic_0001>

<llo_original>
// kernel: tpu_custom_call.1
$region0: #{tpu_custom_call.1}
  #allocation0 [shape = 'u32[]', space=smem, size = 0x4, offset = 0x4, fixed_abs, tag = 'smem constant byte address 0x4 - core index']
  #allocation1 [shape = 'u32[72,128]{1,0:T(1,128)}', space=vmem, size = 0x9000, scoped, tag = 'internal scratch']
  %s0 = inlined_call_operand.hbm [shape: f32[2,8,32], index: 0, kind: input, shape index: {}]
  %s1 = inlined_call_operand.hbm [shape: f32[2,8,32], index: 1, kind: input, shape index: {}]
  %s2 = inlined_call_operand.hbm [shape: f32[8,32], index: 2, kind: input, shape index: {}]
  %s3 = inlined_call_operand.vmem [shape: f32[1,32], index: 3, kind: input, shape index: {}]
  %s4 = inlined_call_operand.vmem [shape: f32[1,32], index: 4, kind: input, shape index: {}]
  %s5 = inlined_call_operand.hbm [shape: f32[2,8,32], index: 5, kind: output, shape index: {}]
  %s6 = sld [smem:[#allocation0]]
  $region65: #{tpu_custom_call.1} parent=0
    _
  %s8 = ssub.s32 1, %s6
  %s9 = scalar_select 0, %s8, %s6
  $region1: #{tpu_custom_call.1} parent=0
    #allocation2 [shape = 'u8[8192]{0}', space=vmem, size = 0x2000, scoped, tag = 'input window, operand 0']
    #allocation3 [shape = 's32[2]{0}', space=sflag, size = 0x8, scoped, tag = 'scoped memory for tpu_custom_call.1']
    #allocation4 [shape = 's32[2]{0}', space=sflag, size = 0x8, scoped, tag = 'scoped memory for tpu_custom_call.1']
    #allocation5 [shape = 'u8[8192]{0}', space=vmem, size = 0x2000, scoped, tag = 'input window, operand 1']
    #allocation6 [shape = 's32[2]{0}', space=sflag, size = 0x8, scoped, tag = 'scoped memory for tpu_custom_call.1']
    #allocation7 [shape = 'u8[4096]{0}', space=vmem, size = 0x1000, scoped, tag = 'input window, operand 2, single buffered']
    #allocation8 [shape = 'u8[8192]{0}', space=vmem, size = 0x2000, scoped, tag = 'output window, operand 0']
    %10 = vsyncpa [#allocation3], 0
    %s11 = scalar_lea.sflag [#allocation3], 1
    %12 = vsyncpa %s11, 0
    %13 = vsyncpa [#allocation6], 0
    %s14 = scalar_lea.sflag [#allocation6], 1
    %15 = vsyncpa %s14, 0
    %16 = vsyncpa [#allocation4], 0
    %s17 = scalar_lea.sflag [#allocation4], 1
    %18 = vsyncpa %s17, 0
    loop: start=0, step=1, limit=4
    $region2: #{tpu_custom_call.1} parent=1 // loop_pre_header
      _
    $region3: #{tpu_custom_call.1} parent=1 // loop_header
      %s20 = sphi 0, %s24
      %p21 = scmp.ge.s32.totalorder %s20, 4
      %s30 = sphi 0, %s32
      %s33 = sphi 0, %s30
      %s34 = sphi 0, %s33
      %s50 = sphi 0, %s34
      %s56 = sphi 0, %s58
      %s59 = sphi 0, %s56
      %s60 = sphi 0, %s59
      %s76 = sphi 0, %s60
      %s80 = sphi 0, %s80
      %s82 = sphi 0, %s80
      %s83 = sphi 0, %s82
      %s97 = sphi 0, %s83
      %s101 = sphi 0, %s101
      %s103 = sphi 0, %s101
      %s104 = sphi 0, %s103
      %s118 = sphi 0, %s104
      %s122 = sphi 0, %s122
      %s124 = sphi 0, %s122
      %s125 = sphi 0, %s124
      %s139 = sphi 0, %s125
      %s145 = sphi 0, %s147
      %s148 = sphi 0, %s145
      %s149 = sphi 0, %s148
      %s165 = sphi 0, %s149
    $region4: #{tpu_custom_call.1} parent=1 // loop_header_branch
      %23 = sbr.rel (%p21) target = $region8
    $region5: #{tpu_custom_call.1} parent=1 // loop_body
      %s25 = ssub.s32 %s20, 1
      %s26 = ssub.s32 %s20, 2
      %s27 = sadd.s32 %s20, 1
      %s28 = ssub.s32 %s20, %s27
      %p29 = scmp.eq.s32.totalorder %s28, 0
      %s31 = sadd.s32 %s30, 1
      %s32 = scalar_select %p29, %s30, %s31
      %p35 = pneg %p29
      %p36 = scmp.eq.s32.totalorder %s20, 1
      %p37 = por %p35, %p36
      %p38 = scmp.ne.s32.totalorder %s30, %s33
      %p39 = scmp.eq.s32.totalorder %s20, 0
      %p40 = por %p38, %p39
      %p41 = scmp.ne.s32.totalorder %s30, %s33
      %p42 = scmp.eq.s32.totalorder %s25, 1
      %p43 = por %p41, %p42
      %p44 = scmp.ne.s32.totalorder %s33, %s34
      %p45 = scmp.eq.s32.totalorder %s25, 0
      %p46 = por %p44, %p45
      %p47 = scmp.ne.s32.totalorder %s33, %s34
      %p48 = scmp.eq.s32.totalorder %s26, 1
      %p49 = por %p47, %p48
      %p51 = scmp.ne.s32.totalorder %s34, %s50
      %p52 = scmp.eq.s32.totalorder %s26, 0
      %p53 = por %p51, %p52
      %s54 = ssub.s32 %s20, %s27
      %p55 = scmp.eq.s32.totalorder %s54, 0
      %s57 = sadd.s32 %s56, 1
      %s58 = scalar_select %p55, %s56, %s57
      %p61 = pneg %p55
      %p62 = scmp.eq.s32.totalorder %s20, 1
      %p63 = por %p61, %p62
      %p64 = scmp.ne.s32.totalorder %s56, %s59
      %p65 = scmp.eq.s32.totalorder %s20, 0
      %p66 = por %p64, %p65
      %p67 = scmp.ne.s32.totalorder %s56, %s59
      %p68 = scmp.eq.s32.totalorder %s25, 1
      %p69 = por %p67, %p68
      %p70 = scmp.ne.s32.totalorder %s59, %s60
      %p71 = scmp.eq.s32.totalorder %s25, 0
      %p72 = por %p70, %p71
      %p73 = scmp.ne.s32.totalorder %s59, %s60
      %p74 = scmp.eq.s32.totalorder %s26, 1
      %p75 = por %p73, %p74
      %p77 = scmp.ne.s32.totalorder %s60, %s76
      %p78 = scmp.eq.s32.totalorder %s26, 0
      %p79 = por %p77, %p78
      %s81 = sadd.s32 %s80, 1
      %p84 = scmp.eq.s32.totalorder %s20, 1
      %p85 = scmp.ne.s32.totalorder %s80, %s82
      %p86 = scmp.eq.s32.totalorder %s20, 0
      %p87 = por %p85, %p86
      %p88 = scmp.ne.s32.totalorder %s80, %s82
      %p89 = scmp.eq.s32.totalorder %s25, 1
      %p90 = por %p88, %p89
      %p91 = scmp.ne.s32.totalorder %s82, %s83
      %p92 = scmp.eq.s32.totalorder %s25, 0
      %p93 = por %p91, %p92
      %p94 = scmp.ne.s32.totalorder %s82, %s83
      %p95 = scmp.eq.s32.totalorder %s26, 1
      %p96 = por %p94, %p95
      %p98 = scmp.ne.s32.totalorder %s83, %s97
      %p99 = scmp.eq.s32.totalorder %s26, 0
      %p100 = por %p98, %p99
      %s102 = sadd.s32 %s101, 1
      %p105 = scmp.eq.s32.totalorder %s20, 1
      %p106 = scmp.ne.s32.totalorder %s101, %s103
      %p107 = scmp.eq.s32.totalorder %s20, 0
      %p108 = por %p106, %p107
      %p109 = scmp.ne.s32.totalorder %s101, %s103
      %p110 = scmp.eq.s32.totalorder %s25, 1
      %p111 = por %p109, %p110
      %p112 = scmp.ne.s32.totalorder %s103, %s104
      %p113 = scmp.eq.s32.totalorder %s25, 0
      %p114 = por %p112, %p113
      %p115 = scmp.ne.s32.totalorder %s103, %s104
      %p116 = scmp.eq.s32.totalorder %s26, 1
      %p117 = por %p115, %p116
      %p119 = scmp.ne.s32.totalorder %s104, %s118
      %p120 = scmp.eq.s32.totalorder %s26, 0
      %p121 = por %p119, %p120
      %s123 = sadd.s32 %s122, 1
      %p126 = scmp.eq.s32.totalorder %s20, 1
      %p127 = scmp.ne.s32.totalorder %s122, %s124
      %p128 = scmp.eq.s32.totalorder %s20, 0
      %p129 = por %p127, %p128
      %p130 = scmp.ne.s32.totalorder %s122, %s124
      %p131 = scmp.eq.s32.totalorder %s25, 1
      %p132 = por %p130, %p131
      %p133 = scmp.ne.s32.totalorder %s124, %s125
      %p134 = scmp.eq.s32.totalorder %s25, 0
      %p135 = por %p133, %p134
      %p136 = scmp.ne.s32.totalorder %s124, %s125
      %p137 = scmp.eq.s32.totalorder %s26, 1
      %p138 = por %p136, %p137
      %p140 = scmp.ne.s32.totalorder %s125, %s139
      %p141 = scmp.eq.s32.totalorder %s26, 0
      %p142 = por %p140, %p141
      %s143 = ssub.s32 %s20, %s27
      %p144 = scmp.eq.s32.totalorder %s143, 0
      %s146 = sadd.s32 %s145, 1
      %s147 = scalar_select %p144, %s145, %s146
      %p150 = pneg %p144
      %p151 = scmp.eq.s32.totalorder %s20, 1
      %p152 = por %p150, %p151
      %p153 = scmp.ne.s32.totalorder %s145, %s148
      %p154 = scmp.eq.s32.totalorder %s20, 0
      %p155 = por %p153, %p154
      %p156 = scmp.ne.s32.totalorder %s145, %s148
      %p157 = scmp.eq.s32.totalorder %s25, 1
      %p158 = por %p156, %p157
      %p159 = scmp.ne.s32.totalorder %s148, %s149
      %p160 = scmp.eq.s32.totalorder %s25, 0
      %p161 = por %p159, %p160
      %p162 = scmp.ne.s32.totalorder %s148, %s149
      %p163 = scmp.eq.s32.totalorder %s26, 1
      %p164 = por %p162, %p163
      %p166 = scmp.ne.s32.totalorder %s149, %s165
      %p167 = scmp.eq.s32.totalorder %s26, 0
      %p168 = por %p166, %p167
      %p169 = scmp.le.s32.totalorder 1, %s20
      %p170 = scmp.lt.s32.totalorder %s20, 3
      %p171 = pnand %p169, %p170
      %p172 = pneg %p171
      // Predicated region
      $region9: #{tpu_custom_call.1} parent=5 // pred_check
        _
      $region10: #{tpu_custom_call.1} parent=5 // pred_check_branch
        %174 = sbr.rel (%p171) target = $region12
      $region11: #{tpu_custom_call.1} parent=5 // pred_region
        %s175 = ssub.s32 %s20, 1
        // Predicated region
        $region13: #{tpu_custom_call.1} parent=11 // pred_check
          %p176 = pneg %p93
        $region14: #{tpu_custom_call.1} parent=11 // pred_check_branch
          %178 = sbr.rel (%p176) target = $region16
        $region15: #{tpu_custom_call.1} parent=11 // pred_region
          %180 = vsyncadd [#allocation6], 0
          %s182 = sshll.u32 %s2, 4
          %s183 = int_to_ptr.hbm [resolvable:$true] %s182
          %s184 = sshll.u32 [#allocation7], 4
          %s185 = int_to_ptr.vmem [resolvable:$true] %s184
          %187 = dma.hbm_to_vmem [thread:$0]  %s183, 128, %s185, [#allocation6]
        $region16: #{tpu_custom_call.1} parent=11 // pred_fallthru
          _
        // Predicated region
        $region17: #{tpu_custom_call.1} parent=11 // pred_check
          %p188 = pneg %p114
        $region18: #{tpu_custom_call.1} parent=11 // pred_check_branch
          %190 = sbr.rel (%p188) target = $region20
        $region19: #{tpu_custom_call.1} parent=11 // pred_region
          _
        $region20: #{tpu_custom_call.1} parent=11 // pred_fallthru
          _
        // Predicated region
        $region21: #{tpu_custom_call.1} parent=11 // pred_check
          %p191 = pneg %p135
        $region22: #{tpu_custom_call.1} parent=11 // pred_check_branch
          %193 = sbr.rel (%p191) target = $region24
        $region23: #{tpu_custom_call.1} parent=11 // pred_region
          _
        $region24: #{tpu_custom_call.1} parent=11 // pred_fallthru
          _
      $region12: #{tpu_custom_call.1} parent=5 // pred_fallthru
        _
      %p194 = scmp.lt.s32.totalorder %s20, 2
      // Predicated region
      $region25: #{tpu_custom_call.1} parent=5 // pred_check
        %p195 = pneg %p194
      $region26: #{tpu_custom_call.1} parent=5 // pred_check_branch
        %197 = sbr.rel (%p195) target = $region28
      $region27: #{tpu_custom_call.1} parent=5 // pred_region
        // Predicated region
        $region29: #{tpu_custom_call.1} parent=27 // pred_check
          %p198 = pneg %p40
        $region30: #{tpu_custom_call.1} parent=27 // pred_check_branch
          %200 = sbr.rel (%p198) target = $region32
        $region31: #{tpu_custom_call.1} parent=27 // pred_region
          %s201 = sand.u32 %s30, 1
          %s202 = scalar_lea.sflag [#allocation3], %s201
          %s203 = sand.u32 %s30, 1
          %s204 = smul.addr %s203, 8
          %s205 = scalar_lea.vmem [#allocation2], %s204
          %207 = vsyncadd %s202, 0
          %s208 = smul.addr %s20, 8
          %s209 = scalar_lea.hbm %s0, %s208
          %s211 = sshll.u32 %s209, 4
          %s212 = int_to_ptr.hbm [resolvable:$true] %s211
          %s213 = sshll.u32 %s205, 4
          %s214 = int_to_ptr.vmem [resolvable:$true] %s213
          %216 = dma.hbm_to_vmem [thread:$0]  %s212, 128, %s214, %s202
        $region32: #{tpu_custom_call.1} parent=27 // pred_fallthru
          _
        // Predicated region
        $region33: #{tpu_custom_call.1} parent=27 // pred_check
          %p217 = pneg %p66
        $region34: #{tpu_custom_call.1} parent=27 // pred_check_branch
          %219 = sbr.rel (%p217) target = $region36
        $region35: #{tpu_custom_call.1} parent=27 // pred_region
          %s220 = sand.u32 %s20, 1
          %s221 = scalar_lea.sflag [#allocation6], %s220
          %s222 = sand.u32 %s56, 1
          %s223 = smul.addr %s222, 8
          %s224 = scalar_lea.vmem [#allocation5], %s223
          %226 = vsyncadd %s221, 0
          %s227 = smul.addr %s20, 8
          %s228 = scalar_lea.hbm %s1, %s227
          %s230 = sshll.u32 %s228, 4
          %s231 = int_to_ptr.hbm [resolvable:$true] %s230
          %s232 = sshll.u32 %s224, 4
          %s233 = int_to_ptr.vmem [resolvable:$true] %s232
          %235 = dma.hbm_to_vmem [thread:$0]  %s231, 128, %s233, %s221
        $region36: #{tpu_custom_call.1} parent=27 // pred_fallthru
          _
      $region28: #{tpu_custom_call.1} parent=5 // pred_fallthru
        _
      %p236 = scmp.le.s32.totalorder 1, %s20
      %p237 = scmp.lt.s32.totalorder %s20, 3
      %p238 = pnand %p236, %p237
      %p239 = pneg %p238
      // Predicated region
      $region37: #{tpu_custom_call.1} parent=5 // pred_check
        _
      $region38: #{tpu_custom_call.1} parent=5 // pred_check_branch
        %241 = sbr.rel (%p238) target = $region40
      $region39: #{tpu_custom_call.1} parent=5 // pred_region
        %s242 = ssub.s32 %s20, 1
        %s243 = sand.u32 %s33, 1
        %s244 = scalar_lea.sflag [#allocation3], %s243
        %s245 = sand.u32 %s33, 1
        %s246 = smul.addr %s245, 8
        %s247 = scalar_lea.vmem [#allocation2], %s246
        // Predicated region
        $region41: #{tpu_custom_call.1} parent=39 // pred_check
          %p248 = pneg %p46
        $region42: #{tpu_custom_call.1} parent=39 // pred_check_branch
          %250 = sbr.rel (%p248) target = $region44
        $region43: #{tpu_custom_call.1} parent=39 // pred_region
          %252 = dma.done %s244, 128
        $region44: #{tpu_custom_call.1} parent=39 // pred_fallthru
          _
        %s253 = sand.u32 %s25, 1
        %s254 = scalar_lea.sflag [#allocation6], %s253
        %s255 = sand.u32 %s59, 1
        %s256 = smul.addr %s255, 8
        %s257 = scalar_lea.vmem [#allocation5], %s256
        // Predicated region
        $region45: #{tpu_custom_call.1} parent=39 // pred_check
          %p258 = pneg %p72
        $region46: #{tpu_custom_call.1} parent=39 // pred_check_branch
          %260 = sbr.rel (%p258) target = $region48
        $region47: #{tpu_custom_call.1} parent=39 // pred_region
          %262 = dma.done %s254, 128
        $region48: #{tpu_custom_call.1} parent=39 // pred_fallthru
          _
        // Predicated region
        $region49: #{tpu_custom_call.1} parent=39 // pred_check
          %p263 = pneg %p93
        $region50: #{tpu_custom_call.1} parent=39 // pred_check_branch
          %265 = sbr.rel (%p263) target = $region52
        $region51: #{tpu_custom_call.1} parent=39 // pred_region
          %267 = dma.done [#allocation6], 128
        $region52: #{tpu_custom_call.1} parent=39 // pred_fallthru
          _
        %s268 = sand.u32 %s33, 1
        %s269 = scalar_lea.sflag [#allocation3], %s268
        %s270 = sand.u32 %s33, 1
        %s271 = smul.addr %s270, 8
        %s272 = scalar_lea.vmem [#allocation2], %s271
        %p273 = pneg %p46
        %p274 = pneg %p43
        %s275 = sand.u32 %s25, 1
        %s276 = scalar_lea.sflag [#allocation6], %s275
        %s277 = sand.u32 %s59, 1
        %s278 = smul.addr %s277, 8
        %s279 = scalar_lea.vmem [#allocation5], %s278
        %p280 = pneg %p72
        %p281 = pneg %p69
        %p282 = pneg %p93
        %p283 = pneg %p90
        %p284 = pneg %p114
        %p285 = pneg %p111
        %p286 = pneg %p135
        %p287 = pneg %p132
        %p288 = pneg %p161
        %p289 = pneg %p158
        %s290 = sand.u32 %s148, 1
        %s291 = scalar_lea.sflag [#allocation4], %s290
        %s292 = sand.u32 %s148, 1
        %s293 = smul.addr %s292, 8
        %s294 = scalar_lea.vmem [#allocation8], %s293
        %v295 = vld [vmem:[%s247] sm:$0xff]
        %v296 = vld [vmem:[%s257] sm:$0xff]
        %v297 = vadd.f32 %v295, %v296
        %v298 = vld [vmem:[#allocation7] sm:$0xff]
        %v299 = vadd.f32 %v297, %v298
        %v300 = vld [vmem:[%s3] sm:$0x1]
        %v301 = vld [vmem:[%s4] sm:$0x1]
        %vm302 = vcmask 261120
        %v303 = vsel %vm302, %v299, 0.0
        %304 = vadd.xlane.f32.xlu0 %v303
        %v305 = vpop.xlane.xlu0 %304
        %v306 = vrcp.pop 32.0
        %v307 = vmul.f32 32.0, %v306
        %v308 = vsub.f32 1.0, %v307
        %v309 = vmul.f32 %v306, %v308
        %v310 = vadd.f32 %v306, %v309
        %vm311 = vweird.f32 %v306
        %v312 = vsel %vm311, %v306, %v310
        %v313 = vmul.f32 %v305, %v312
        %v314 = vsub.f32 %v299, %v313
        %v315 = vmul.f32 %v314, %v314
        %v316 = vsel %vm302, %v315, 0.0
        %317 = vadd.xlane.f32.xlu0 %v316
        %v318 = vpop.xlane.xlu0 %317
        %v319 = vmul.f32 %v318, %v312
        %v320 = vadd.f32 %v319, 1e-12
        %v321 = vrsqrt.pop %v320
        %v322 = vmul.f32 %v321, %v320
        %v323 = vmul.f32 %v322, %v321
        %v324 = vmul.f32 0.5, %v323
        %v325 = vsub.f32 1.5, %v324
        %v326 = vmul.f32 %v321, %v325
        %vm327 = vweird.f32 %v320
        %vm328 = vweird.f32 %v321
        %vm329 = vmor %vm327, %vm328
        %v330 = vsel %vm329, %v321, %v326
        %v331 = vmul.f32 %v314, %v330
        %v333 = vperm.slane %v300, 0
        %v335 = vmul.f32 %v331, %v333
        %v337 = vperm.slane %v301, 0
        %v339 = vadd.f32 %v335, %v337
        %340 = vst.msk [vmem:[%s294] sm:$0xff] %vm302, %v339
        %s341 = sand.u32 %s148, 1
        %s342 = scalar_lea.sflag [#allocation4], %s341
        %s343 = sand.u32 %s148, 1
        %s344 = smul.addr %s343, 8
        %s345 = scalar_lea.vmem [#allocation8], %s344
        // Predicated region
        $region53: #{tpu_custom_call.1} parent=39 // pred_check
          %p346 = pneg %p158
        $region54: #{tpu_custom_call.1} parent=39 // pred_check_branch
          %348 = sbr.rel (%p346) target = $region56
        $region55: #{tpu_custom_call.1} parent=39 // pred_region
          %350 = vsyncadd %s342, 0
          %s351 = smul.addr %s25, 8
          %s352 = scalar_lea.hbm %s5, %s351
          %s354 = sshll.u32 %s345, 4
          %s355 = int_to_ptr.vmem [resolvable:$true] %s354
          %s356 = sshll.u32 %s352, 4
          %s357 = int_to_ptr.hbm [resolvable:$true] %s356
          %359 = dma.vmem_to_hbm [thread:$0]  %s355, 128, %s357, %s342
        $region56: #{tpu_custom_call.1} parent=39 // pred_fallthru
          _
      $region40: #{tpu_custom_call.1} parent=5 // pred_fallthru
        _
      %p360 = scmp.le.s32.totalorder 2, %s20
      // Predicated region
      $region57: #{tpu_custom_call.1} parent=5 // pred_check
        %p361 = pneg %p360
      $region58: #{tpu_custom_call.1} parent=5 // pred_check_branch
        %363 = sbr.rel (%p361) target = $region60
      $region59: #{tpu_custom_call.1} parent=5 // pred_region
        %s364 = ssub.s32 %s20, 2
        // Predicated region
        $region61: #{tpu_custom_call.1} parent=59 // pred_check
          %p365 = pneg %p164
        $region62: #{tpu_custom_call.1} parent=59 // pred_check_branch
          %367 = sbr.rel (%p365) target = $region64
        $region63: #{tpu_custom_call.1} parent=59 // pred_region
          %s368 = sand.u32 %s149, 1
          %s369 = scalar_lea.sflag [#allocation4], %s368
          %s370 = sand.u32 %s149, 1
          %s371 = smul.addr %s370, 8
          %s372 = scalar_lea.vmem [#allocation8], %s371
          %374 = dma.done %s369, 128
        $region64: #{tpu_custom_call.1} parent=59 // pred_fallthru
          _
      $region60: #{tpu_custom_call.1} parent=5 // pred_fallthru
        _
    $region6: #{tpu_custom_call.1} parent=1 // loop_footer
      %s24 = sadd.s32 1, %s20
    $region7: #{tpu_custom_call.1} parent=1 // loop_footer_branch
      %19 = sbr.rel target = $region3
    $region8: #{tpu_custom_call.1} parent=1 // loop_exit
      _
    %375 = vsyncpa [#allocation3], 1
    %s376 = scalar_lea.sflag [#allocation3], 1
    %377 = vsyncpa %s376, 1
    %378 = vsyncpa [#allocation6], 1
    %s379 = scalar_lea.sflag [#allocation6], 1
    %380 = vsyncpa %s379, 1
    %381 = vsyncpa [#allocation4], 1
    %s382 = scalar_lea.sflag [#allocation4], 1
    %383 = vsyncpa %s382, 1

</llo_original>
